<compile_context>
chip_gen: v7x
topology: tpu7x:2x2x1
jax: 0.10.0
libtpu: 0.0.40
codegen_flags: <defaults>
</compile_context>

<pallas_src>
import functools

import jax
import jax.numpy as jnp
from jax import lax
from jax.experimental import pallas as pl
from jax.experimental.pallas import tpu as pltpu


def _proto_kernel(x_ref, xsq_ref, p_ref, psq_ref, dist_ref, sim_ref, *, S, B, tile_n):
    # x_ref:    (C, tile_n) bf16   fused-batch feature columns
    # xsq_ref:  (1, tile_n) f32    hoisted ||x||^2 per column
    # p_ref:    (P, C)      f32    full prototype matrix (resident across grid)
    # psq_ref:  (P, 1)      f32    hoisted ||p||^2
    # dist_ref: (P, tile_n) f32    squared distances (lane-dense store)
    # sim_ref:  (1, P, B)   f32    per-tile partial min-distance per batch segment
    x = x_ref[...]
    xsq = xsq_ref[...]
    psq = psq_ref[...]

    # bf16 MXU cross term with f32 accumulation; norms / combine stay f32.
    # TODO(synk): for strict f32 parity at large C, run the cross term at
    # precision=HIGHEST (extra MXU passes are hidden under the store-bound path).
    cross = jnp.dot(
        p_ref[...].astype(jnp.bfloat16), x, preferred_element_type=jnp.float32
    )                                                     # (P, tile_n)

    # ||p - x||^2; clamp absorbs bf16/f32 cancellation from the expansion.
    dist = jnp.maximum(psq + xsq - 2.0 * cross, 0.0)

    # The ONLY full-slab store (activation map = -dist is produced in wrapper).
    dist_ref[...] = dist

    # Per-batch partial min over this tile's lanes.  Segment membership comes
    # from one hoisted lane iota with static boundaries (no unaligned lane
    # slices, no vector integer division).  Ragged-tile (out-of-range) lanes
    # fall outside every segment and are masked to +inf.
    gidx = pl.program_id(0) * tile_n + lax.broadcasted_iota(
        jnp.int32, (1, tile_n), 1
    )
    for b in range(B):  # B is small & static; this rides idle VPU/XLU slots.
        in_seg = jnp.logical_and(gidx >= b * S, gidx < (b + 1) * S)
        masked = jnp.where(in_seg, dist, jnp.inf)
        sim_ref[0, :, b:b + 1] = jnp.min(masked, axis=1, keepdims=True)


def _vmem_capacity_bytes():
    try:
        return int(pltpu.get_tpu_info().vmem_capacity_bytes)
    except Exception:
        return 64 * 1024 * 1024  # conservative (v7x per-TC) fallback


def _tile_footprint_bytes(tile_n, P, C):
    """Conservative per-kernel VMEM footprint for a given fused-lane tile."""
    x_io = 2 * C * tile_n * 2                 # bf16 x tile, double-buffered
    xsq_io = 2 * 8 * tile_n * 4               # f32 xsq tile (sublane-padded), dbl-buf
    dist_io = 2 * P * tile_n * 4              # f32 dist tile, dbl-buf
    protos = 2 * P * C * 4                    # resident prototype matrix (worst case)
    psq = 2 * max(P, 8) * 128 * 4             # (P,1) padded to 128 lanes
    sim = 2 * max(P, 8) * 128 * 4             # tiny sim output block
    temps = 3 * P * tile_n * 4 + C * tile_n * 4  # cross/dist/mask temporaries
    return x_io + xsq_io + dist_io + protos + psq + sim + temps


def _pick_tile(N, P, C):
    """VMEM-budget-aware, generation-aware lane tile over the fused B*S axis."""
    cap = _vmem_capacity_bytes()
    budget = int(cap * 0.7)
    if N <= 128:
        tile_n = N  # single full-array tile (block == full dim is allowed)
    else:
        # Keep at least 2 grid steps so the "parallel" axis can feed both
        # v7x TensorCores; otherwise take the biggest 128-multiple that fits.
        max_tile = max(128, ((N // 2) // 128) * 128)
        tile_n = max_tile
        while tile_n > 128 and _tile_footprint_bytes(tile_n, P, C) > budget:
            tile_n -= 128
    fp = _tile_footprint_bytes(tile_n, P, C)
    vmem_limit = int(min(cap, max(32 * 1024 * 1024, int(fp * 1.25))))
    return tile_n, vmem_limit


def prototype_layer_forward(x, prototype_vectors):
    """x: (B, C, H, W) float32, prototype_vectors: (P, C) float32."""
    B, C, H, W = x.shape
    S = H * W
    N = B * S
    P = prototype_vectors.shape[0]

    protos = prototype_vectors.astype(jnp.float32)
    psq = jnp.sum(protos * protos, axis=1, keepdims=True)            # (P, 1) f32

    # Layout plumbing + hoisted ||x||^2 in one fused pass over x:
    # (B,C,H,W) -> (C, B*S); xsq stays f32, kernel x stream is bf16.
    x_cn = jnp.transpose(x.astype(jnp.float32).reshape(B, C, S), (1, 0, 2)).reshape(C, N)
    xsq = jnp.sum(x_cn * x_cn, axis=0, keepdims=True)                # (1, N) f32
    x_bf16 = x_cn.astype(jnp.bfloat16)                               # (C, N) bf16

    tile_n, vmem_limit = _pick_tile(N, P, C)
    n_tiles = -(-N // tile_n)

    kernel = functools.partial(_proto_kernel, S=S, B=B, tile_n=tile_n)

    cost = pl.CostEstimate(
        flops=2 * P * C * N,
        transcendentals=0,
        bytes_accessed=2 * C * N + 4 * N + 4 * P * C + 4 * P + 4 * P * N
        + 4 * n_tiles * P * B,
    )

    dist_pn, sim_tpb = pl.pallas_call(
        kernel,
        out_shape=(
            jax.ShapeDtypeStruct((P, N), jnp.float32),           # distances (P, B*S)
            jax.ShapeDtypeStruct((n_tiles, P, B), jnp.float32),  # partial segment mins
        ),
        grid_spec=pltpu.PrefetchScalarGridSpec(
            num_scalar_prefetch=0,
            grid=(n_tiles,),
            in_specs=[
                pl.BlockSpec((C, tile_n), lambda t: (0, t)),
                pl.BlockSpec((1, tile_n), lambda t: (0, t)),
                pl.BlockSpec((P, C), lambda t: (0, 0)),
                pl.BlockSpec((P, 1), lambda t: (0, 0)),
            ],
            out_specs=[
                pl.BlockSpec((P, tile_n), lambda t: (0, t)),
                pl.BlockSpec((1, P, B), lambda t: (t, 0, 0)),
            ],
        ),
        compiler_params=pltpu.CompilerParams(
            dimension_semantics=("parallel",),
            vmem_limit_bytes=vmem_limit,
        ),
        cost_estimate=cost,
    )(x_bf16, xsq, protos, psq)

    # Finish the tiny similarity reduction: min over tiles, negate, (B, P).
    similarities = -jnp.min(sim_tpb, axis=0).T                       # (B, P)

    # Layout plumbing back to the module-facing shapes (activation map is the
    # negate fused into this pass; no second full-slab store in the kernel).
    distances = jnp.transpose(dist_pn.reshape(P, B, S), (1, 0, 2))   # (B, P, S)
    activation_maps = (-distances).reshape(B, P, H, W)               # (B, P, H, W)

    return {
        "similarities": similarities,
        "distances": distances,
        "activation_maps": activation_maps,
    }


def _reference_forward(x, prototypes):
    """Pure-JAX reference matching the PyTorch semantics exactly (f32)."""
    B, C, H, W = x.shape
    x_flat = x.reshape(B, C, H * W)                              # (B, C, S)
    diff = x_flat[:, None, :, :] - prototypes[None, :, :, None]  # (B, P, C, S)
    distances = jnp.sum(diff * diff, axis=2)                     # (B, P, S)
    similarities = -distances
    max_similarities = jnp.max(similarities, axis=2)             # (B, P)
    activation_maps = similarities.reshape(B, prototypes.shape[0], H, W)
    return max_similarities, distances, activation_maps


def _run_case(key, B, C, H, W, P):
    kx, kp = jax.random.split(key)
    x = jax.random.normal(kx, (B, C, H, W), dtype=jnp.float32)
    prototype_vectors = jax.random.normal(kp, (P, C), dtype=jnp.float32)

    out = jax.jit(prototype_layer_forward)(x, prototype_vectors)
    jax.block_until_ready(out)

    ref_sim, ref_dist, ref_maps = _reference_forward(x, prototype_vectors)
    assert out["similarities"].shape == (B, P)
    assert out["distances"].shape == (B, P, H * W)
    assert out["activation_maps"].shape == (B, P, H, W)
    # Tolerances reflect the bf16 MXU cross term (norms and combine stay f32).
    assert jnp.allclose(out["distances"], ref_dist, atol=5e-1, rtol=1e-2)
    assert jnp.allclose(out["similarities"], ref_sim, atol=5e-1, rtol=1e-2)
    assert jnp.allclose(out["activation_maps"], ref_maps, atol=5e-1, rtol=1e-2)


if __name__ == "__main__":
    key = jax.random.PRNGKey(0)
    k1, k2 = jax.random.split(key)

    # Case 1: batch=2, feature_dim=32, 8x8 spatial, 16 prototypes
    # (fused axis is exactly 128 lanes -> single full tile).
    _run_case(k1, B=2, C=32, H=8, W=8, P=16)

    # Case 2: ProtoPNet-style 7x7 spatial (S=49, not lane-aligned) with B=3:
    # exercises the batch-decoupled tiling + ragged last tile + partial
    # per-segment mins combined in the wrapper.
    _run_case(k2, B=3, C=32, H=7, W=7, P=16)

    print("KERNEL_OK")
</pallas_src>

<mosaic_0001>
module attributes {stable_mosaic.version = 11 : i64} {
  func.func @_proto_kernel(%arg0: i32, %arg1: memref<32x128xbf16, #tpu.memory_space<vmem>>, %arg2: memref<1x128xf32, #tpu.memory_space<vmem>>, %arg3: memref<16x32xf32, #tpu.memory_space<vmem>>, %arg4: memref<16x1xf32, #tpu.memory_space<vmem>>, %arg5: memref<16x128xf32, #tpu.memory_space<vmem>>, %arg6: memref<1x16x2xf32, #tpu.memory_space<vmem>>) attributes {dimension_semantics = [#tpu.dimension_semantics<parallel>], iteration_bounds = array<i64: 1>, scalar_prefetch = 0 : i64, scratch_operands = 0 : i64, tpu.core_type = #tpu.core_type<tc>, window_params = [{transform_indices = @transform_0, window_bounds = array<i64: 32, 128>}, {transform_indices = @transform_1, window_bounds = array<i64: 1, 128>}, {pipeline_mode = #tpu.pipeline_mode<synchronous>, transform_indices = @transform_2, window_bounds = array<i64: 16, 32>}, {pipeline_mode = #tpu.pipeline_mode<synchronous>, transform_indices = @transform_3, window_bounds = array<i64: 16, 1>}, {transform_indices = @transform_4, window_bounds = array<i64: 16, 128>}, {transform_indices = @transform_5, window_bounds = array<i64: 1, 16, 2>}]} {
    %c0 = arith.constant 0 : index
    %c0_0 = arith.constant 0 : index
    %0 = vector.load %arg1[%c0, %c0_0] : memref<32x128xbf16, #tpu.memory_space<vmem>>, vector<32x128xbf16>
    %c0_1 = arith.constant 0 : index
    %c0_2 = arith.constant 0 : index
    %1 = vector.load %arg2[%c0_1, %c0_2] : memref<1x128xf32, #tpu.memory_space<vmem>>, vector<1x128xf32>
    %c0_3 = arith.constant 0 : index
    %c0_4 = arith.constant 0 : index
    %2 = vector.load %arg4[%c0_3, %c0_4] : memref<16x1xf32, #tpu.memory_space<vmem>>, vector<16x1xf32>
    %c0_5 = arith.constant 0 : index
    %c0_6 = arith.constant 0 : index
    %3 = vector.load %arg3[%c0_5, %c0_6] : memref<16x32xf32, #tpu.memory_space<vmem>>, vector<16x32xf32>
    %4 = arith.truncf %3 : vector<16x32xf32> to vector<16x32xbf16>
    %cst = arith.constant dense<0.000000e+00> : vector<16x128xf32>
    %5 = tpu.matmul %4, %0, %cst {dimension_numbers = #tpu.dot_dimension_numbers<[1], [0], [0], [1], [0, 0, 1, 1], [], []>} : vector<16x32xbf16>, vector<32x128xbf16>, vector<16x128xf32> -> vector<16x128xf32>
    %6 = vector.broadcast %2 : vector<16x1xf32> to vector<16x128xf32>
    %7 = vector.broadcast %1 : vector<1x128xf32> to vector<16x128xf32>
    %8 = arith.addf %6, %7 : vector<16x128xf32>
    %cst_7 = arith.constant 2.000000e+00 : f32
    %9 = vector.broadcast %cst_7 : f32 to vector<16x128xf32>
    %10 = arith.mulf %9, %5 : vector<16x128xf32>
    %11 = arith.subf %8, %10 : vector<16x128xf32>
    %cst_8 = arith.constant 0.000000e+00 : f32
    %12 = vector.broadcast %cst_8 : f32 to vector<16x128xf32>
    %13 = arith.maximumf %11, %12 : vector<16x128xf32>
    %c0_9 = arith.constant 0 : index
    %c0_10 = arith.constant 0 : index
    %14 = vector.load %arg5[%c0_9, %c0_10] : memref<16x128xf32, #tpu.memory_space<vmem>>, vector<16x128xf32>
    tpu.vector_store %arg5[%c0_9, %c0_10], %13 {strides = array<i32>} : memref<16x128xf32, #tpu.memory_space<vmem>>, vector<16x128xf32>,
    %c128_i32 = arith.constant 128 : i32
    %15 = arith.muli %arg0, %c128_i32 : i32
    %16 = tpu.iota {dimensions = array<i32: 1>} : vector<1x128xi32>
    %17 = vector.broadcast %15 : i32 to vector<1x128xi32>
    %18 = arith.addi %17, %16 : vector<1x128xi32>
    %c0_i32 = arith.constant 0 : i32
    %19 = vector.broadcast %c0_i32 : i32 to vector<1x128xi32>
    %20 = arith.cmpi sge, %18, %19 : vector<1x128xi32>
    %c64_i32 = arith.constant 64 : i32
    %21 = vector.broadcast %c64_i32 : i32 to vector<1x128xi32>
    %22 = arith.cmpi slt, %18, %21 : vector<1x128xi32>
    %23 = arith.andi %20, %22 : vector<1x128xi1>
    %cst_11 = arith.constant 0x7F800000 : f32
    %24 = vector.shape_cast %23 : vector<1x128xi1> to vector<1x128xi1>
    %25 = vector.broadcast %24 : vector<1x128xi1> to vector<16x128xi1>
    %26 = vector.broadcast %cst_11 : f32 to vector<16x128xf32>
    %27 = arith.select %25, %13, %26 : vector<16x128xi1>, vector<16x128xf32>
    %cst_12 = arith.constant dense<0x7F800000> : vector<16xf32>
    %28 = vector.multi_reduction <minimumf>, %27, %cst_12 [1] : vector<16x128xf32> to vector<16xf32>
    %29 = vector.shape_cast %28 : vector<16xf32> to vector<16x1xf32>
    %c0_13 = arith.constant 0 : index
    %c0_14 = arith.constant 0 : index
    %c0_15 = arith.constant 0 : index
    %30 = vector.load %arg6[%c0_13, %c0_14, %c0_15] : memref<1x16x2xf32, #tpu.memory_space<vmem>>, vector<1x16x1xf32>
    %31 = vector.shape_cast %30 : vector<1x16x1xf32> to vector<16x1xf32>
    %32 = vector.shape_cast %29 : vector<16x1xf32> to vector<1x16x1xf32>
    tpu.vector_store %arg6[%c0_13, %c0_14, %c0_15], %32 {strides = array<i32>} : memref<1x16x2xf32, #tpu.memory_space<vmem>>, vector<1x16x1xf32>,
    %c64_i32_16 = arith.constant 64 : i32
    %33 = vector.broadcast %c64_i32_16 : i32 to vector<1x128xi32>
    %34 = arith.cmpi sge, %18, %33 : vector<1x128xi32>
    %c128_i32_17 = arith.constant 128 : i32
    %35 = vector.broadcast %c128_i32_17 : i32 to vector<1x128xi32>
    %36 = arith.cmpi slt, %18, %35 : vector<1x128xi32>
    %37 = arith.andi %34, %36 : vector<1x128xi1>
    %cst_18 = arith.constant 0x7F800000 : f32
    %38 = vector.shape_cast %37 : vector<1x128xi1> to vector<1x128xi1>
    %39 = vector.broadcast %38 : vector<1x128xi1> to vector<16x128xi1>
    %40 = vector.broadcast %cst_18 : f32 to vector<16x128xf32>
    %41 = arith.select %39, %13, %40 : vector<16x128xi1>, vector<16x128xf32>
    %cst_19 = arith.constant dense<0x7F800000> : vector<16xf32>
    %42 = vector.multi_reduction <minimumf>, %41, %cst_19 [1] : vector<16x128xf32> to vector<16xf32>
    %43 = vector.shape_cast %42 : vector<16xf32> to vector<16x1xf32>
    %c0_20 = arith.constant 0 : index
    %c0_21 = arith.constant 0 : index
    %c1 = arith.constant 1 : index
    %44 = vector.load %arg6[%c0_20, %c0_21, %c1] : memref<1x16x2xf32, #tpu.memory_space<vmem>>, vector<1x16x1xf32>
    %45 = vector.shape_cast %44 : vector<1x16x1xf32> to vector<16x1xf32>
    %46 = vector.shape_cast %43 : vector<16x1xf32> to vector<1x16x1xf32>
    tpu.vector_store %arg6[%c0_20, %c0_21, %c1], %46 {strides = array<i32>} : memref<1x16x2xf32, #tpu.memory_space<vmem>>, vector<1x16x1xf32>,
    return
  }
  func.func @transform_0(%arg0: i32) -> (i32, i32) {
    %c0_i32 = arith.constant 0 : i32
    %c0_i32_0 = arith.constant 0 : i32
    return %c0_i32, %arg0 : i32, i32
  }
  func.func @transform_1(%arg0: i32) -> (i32, i32) {
    %c0_i32 = arith.constant 0 : i32
    %c0_i32_0 = arith.constant 0 : i32
    return %c0_i32, %arg0 : i32, i32
  }
  func.func @transform_2(%arg0: i32) -> (i32, i32) {
    %c0_i32 = arith.constant 0 : i32
    %c0_i32_0 = arith.constant 0 : i32
    %c0_i32_1 = arith.constant 0 : i32
    return %c0_i32, %c0_i32_0 : i32, i32
  }
  func.func @transform_3(%arg0: i32) -> (i32, i32) {
    %c0_i32 = arith.constant 0 : i32
    %c0_i32_0 = arith.constant 0 : i32
    %c0_i32_1 = arith.constant 0 : i32
    return %c0_i32, %c0_i32_0 : i32, i32
  }
  func.func @transform_4(%arg0: i32) -> (i32, i32) {
    %c0_i32 = arith.constant 0 : i32
    %c0_i32_0 = arith.constant 0 : i32
    return %c0_i32, %arg0 : i32, i32
  }
  func.func @transform_5(%arg0: i32) -> (i32, i32, i32) {
    %c0_i32 = arith.constant 0 : i32
    %c0_i32_0 = arith.constant 0 : i32
    %c0_i32_1 = arith.constant 0 : i32
    return %arg0, %c0_i32, %c0_i32_0 : i32, i32, i32
  }
}

</mosaic_0001>

<llo_original>
// kernel: neg.1
$region0: #{neg.1}
  #allocation0 [shape = 's32[1]{0}', space=sflag, size = 0x4, scoped, tag = 'scoped memory for neg.1']
  %s0 = inlined_call_operand.vmem [shape: f32[1,16,2], index: 0, kind: input, shape index: {}]
  %s1 = inlined_call_operand.vmem [shape: f32[1,16,2], index: 1, kind: output, shape index: {}]
  %v2 = vld [vmem:[%s0] sm:$0xff]
  %3 = xla_tuple %v2
  %4 = xla_tuple %3
  %v5 = vxor.u32 %v2, 2147483648
  %6 = xla_tuple %v5
  %7 = vst [vmem:[%s1] sm:$0xff] %v5
  %s8 = scalar_lea.vmem %s0, 8
  %v9 = vld [vmem:[%s8] sm:$0xff]
  %10 = xla_tuple %v9
  %11 = xla_tuple %10
  %v12 = vxor.u32 %v9, 2147483648
  %13 = xla_tuple %v12
  %s14 = scalar_lea.vmem %s1, 8
  %15 = vst [vmem:[%s14] sm:$0xff] %v12

// kernel: prototype_layer_forward.1
$region0: #{prototype_layer_forward.1}
  #allocation0 [shape = 'u32[]', space=smem, size = 0x4, offset = 0x4, fixed_abs, tag = 'smem constant byte address 0x4 - core index']
  #allocation1 [shape = 'u32[144,128]{1,0:T(1,128)}', space=vmem, size = 0x12000, scoped, tag = 'internal scratch']
  %s0 = inlined_call_operand.vmem [shape: bf16[32,128], index: 0, kind: input, shape index: {}]
  %s1 = inlined_call_operand.vmem [shape: f32[1,128], index: 1, kind: input, shape index: {}]
  %s2 = inlined_call_operand.vmem [shape: f32[16,32], index: 2, kind: input, shape index: {}]
  %s3 = inlined_call_operand.vmem [shape: f32[16,1], index: 3, kind: input, shape index: {}]
  %s4 = inlined_call_operand.vmem [shape: f32[16,128], index: 4, kind: output, shape index: {0}]
  %s5 = inlined_call_operand.vmem [shape: f32[1,16,2], index: 5, kind: output, shape index: {1}]
  %6 = xla_tuple %s4, %s5
  %s7 = sld [smem:[#allocation0]]
  $region34: #{prototype_layer_forward.1} parent=0
    _
  %s9 = ssub.s32 1, %s7
  %s10 = scalar_select 0, %s9, %s7
  // Predicated region
  $region2: #{prototype_layer_forward.1} parent=0 // pred_check
    _
  $region3: #{prototype_layer_forward.1} parent=0 // pred_check_branch
    %12 = sbr.rel (0) target = $region5
  $region4: #{prototype_layer_forward.1} parent=0 // pred_region
    _
  $region5: #{prototype_layer_forward.1} parent=0 // pred_fallthru
    _
  // Predicated region
  $region6: #{prototype_layer_forward.1} parent=0 // pred_check
    _
  $region7: #{prototype_layer_forward.1} parent=0 // pred_check_branch
    %14 = sbr.rel (0) target = $region9
  $region8: #{prototype_layer_forward.1} parent=0 // pred_region
    _
  $region9: #{prototype_layer_forward.1} parent=0 // pred_fallthru
    _
  // Predicated region
  $region10: #{prototype_layer_forward.1} parent=0 // pred_check
    _
  $region11: #{prototype_layer_forward.1} parent=0 // pred_check_branch
    %16 = sbr.rel (0) target = $region13
  $region12: #{prototype_layer_forward.1} parent=0 // pred_region
    _
  $region13: #{prototype_layer_forward.1} parent=0 // pred_fallthru
    _
  // Predicated region
  $region14: #{prototype_layer_forward.1} parent=0 // pred_check
    _
  $region15: #{prototype_layer_forward.1} parent=0 // pred_check_branch
    %18 = sbr.rel (0) target = $region17
  $region16: #{prototype_layer_forward.1} parent=0 // pred_region
    _
  $region17: #{prototype_layer_forward.1} parent=0 // pred_fallthru
    _
  %v20 = vld [vmem:[%s0] sm:$0xf]
  %v21 = vld [vmem:[%s0 + $0x4] sm:$0xf]
  %v22 = vld [vmem:[%s0 + $0x8] sm:$0xf]
  %v23 = vld [vmem:[%s0 + $0xc] sm:$0xf]
  %v24 = vld [vmem:[%s1] sm:$0x1]
  %v25 = vld [vmem:[%s3] sm:$0xff]
  %v26 = vld [vmem:[%s3 + $0x8] sm:$0xff]
  %v27 = vld [vmem:[%s2] sm:$0xff]
  %v28 = vld [vmem:[%s2 + $0x8] sm:$0xff]
  %v29 = vpack.c.bf16 %v28, %v27
  %v34 = vunpack.c.l.b16 %v20
  %v35 = vunpack.c.l.b16 %v21
  %v36 = vunpack.c.l.b16 %v22
  %v37 = vunpack.c.l.b16 %v23
  %v38 = vpack.c.b16 %v35, %v34
  %v39 = vpack.c.b16 %v37, %v36
  %vm42 = vcmask 261120
  %v44 = vsel %vm42, %v29, 0
  %46 = vmatprep.subr.bf16.mxu0 0
  %47 = vmatpush1.bf16.msra.mxu0 %v38
  %48 = vmatprep.subr.bf16.mxu0 0
  %49 = vmatpush1.bf16.msra.mxu0 %v39
  %50 = vmatprep.subr.bf16.mxu0 0
  %51 = vmatpush1.bf16.msra.mxu0 0
  %52 = vmatprep.subr.bf16.mxu0 0
  %53 = vmatpush1.bf16.msra.mxu0 0
  %54 = vmatprep.subr.bf16.mxu0 0
  %55 = vmatpush1.bf16.msra.mxu0 0
  %56 = vmatprep.subr.bf16.mxu0 0
  %57 = vmatpush1.bf16.msra.mxu0 0
  %58 = vmatprep.subr.bf16.mxu0 0
  %59 = vmatpush1.bf16.msra.mxu0 0
  %60 = vmatprep.subr.bf16.mxu0 0
  %61 = vmatpush1.bf16.msra.mxu0 0
  %62 = vmatprep.subr.bf16.mxu0 0
  %63 = vmatpush1.bf16.msra.mxu0 0
  %64 = vmatprep.subr.bf16.mxu0 0
  %65 = vmatpush1.bf16.msra.mxu0 0
  %66 = vmatprep.subr.bf16.mxu0 0
  %67 = vmatpush1.bf16.msra.mxu0 0
  %68 = vmatprep.subr.bf16.mxu0 0
  %69 = vmatpush1.bf16.msra.mxu0 0
  %70 = vmatprep.subr.bf16.mxu0 0
  %71 = vmatpush1.bf16.msra.mxu0 0
  %72 = vmatprep.subr.bf16.mxu0 0
  %73 = vmatpush1.bf16.msra.mxu0 0
  %74 = vmatprep.subr.bf16.mxu0 0
  %75 = vmatpush1.bf16.msra.mxu0 0
  %76 = vmatprep.subr.bf16.mxu0 0
  %77 = vmatpush1.bf16.msra.mxu0 0
  %78 = vmatprep.mubr.bf16.mxu0 0
  %79 = vmatmul.mubr.bf16.gmra.mrb[0].mxu0 %v44
  %v80 = vpop.f32.mrb[0].mxu0
  %v81 = vadd.f32 0.0, %v80
  %v82 = vpop.f32.mrb[0].mxu0
  %v83 = vpop.f32.mrb[0].mxu0
  %v84 = vadd.f32 0.0, %v83
  %v85 = vpop.f32.mrb[0].mxu0
  %86 = vdwg.mxu0
  %88 = vset.pattern.permute.xlu0 0
  %89 = vperm.xlu0 %88, %v25
  %v90 = vpop.permute.xlu0 %89
  %93 = vset.pattern.permute.xlu0 0
  %94 = vperm.xlu0 %93, %v26
  %v95 = vpop.permute.xlu0 %94
  %v98 = vlaneseq
  %v99 = vshrl.u32 %v98, 7
  %v100 = vsub.s32 0, %v99
  %v101 = vrot.slane %v24, %v100
  %v103 = vadd.f32 %v90, %v101
  %v104 = vadd.f32 %v95, %v101
  %v105 = vmul.f32 %v81, 2.0
  %v106 = vmul.f32 %v84, 2.0
  %v107 = vsub.f32 %v103, %v105
  %v108 = vsub.f32 %v104, %v106
  %v109 = vmax.f32 %v107, 0.0
  %v110 = vmax.f32 %v108, 0.0
  %111 = vst [vmem:[%s4] sm:$0xff] %v109
  %112 = vst [vmem:[%s4 + $0x8] sm:$0xff] %v110
  %s113 = smul.u32 0, 128
  %v114 = vlaneseq
  %v115 = vand.u32 %v114, 127
  %v116 = vstv %s113
  %v117 = vadd.s32 %v116, %v115
  %vm118 = vcmp.ge.s32.totalorder %v117, 0
  %vm119 = vcmp.lt.s32.totalorder %v117, 64
  %vm120 = vmand %vm118, %vm119
  %v121 = vsel %vm120, 1, 0
  %vm122 = vcmp.eq.s32.totalorder %v121, 1
  %v123 = vsel %vm122, %v109, inf
  %v124 = vsel %vm122, %v110, inf
  %125 = vmin.xlane.f32.xlu0 %v123
  %v126 = vpop.xlane.xlu0 %125
  %127 = vmin.xlane.f32.xlu0 %v124
  %v128 = vpop.xlane.xlu0 %127
  %vm129 = vcmask 7168
  %130 = vst.msk [vmem:[%s5] sm:$0xff] %vm129, %v126
  %131 = vst.msk [vmem:[%s5 + $0x8] sm:$0xff] %vm129, %v128
  %vm132 = vcmp.ge.s32.totalorder %v117, 64
  %vm133 = vcmp.lt.s32.totalorder %v117, 128
  %vm134 = vmand %vm132, %vm133
  %v135 = vsel %vm134, 1, 0
  %vm136 = vcmp.eq.s32.totalorder %v135, 1
  %v137 = vsel %vm136, %v109, inf
  %v138 = vsel %vm136, %v110, inf
  %139 = vmin.xlane.f32.xlu0 %v137
  %v140 = vpop.xlane.xlu0 %139
  %141 = vmin.xlane.f32.xlu0 %v138
  %v142 = vpop.xlane.xlu0 %141
  %vm143 = vcmask 15368
  %144 = vst.msk [vmem:[%s5] sm:$0xff] %vm143, %v140
  %145 = vst.msk [vmem:[%s5 + $0x8] sm:$0xff] %vm143, %v142
  // Predicated region
  $region18: #{prototype_layer_forward.1} parent=0 // pred_check
    _
  $region19: #{prototype_layer_forward.1} parent=0 // pred_check_branch
    %147 = sbr.rel (0) target = $region21
  $region20: #{prototype_layer_forward.1} parent=0 // pred_region
    _
  $region21: #{prototype_layer_forward.1} parent=0 // pred_fallthru
    _
  // Predicated region
  $region22: #{prototype_layer_forward.1} parent=0 // pred_check
    _
  $region23: #{prototype_layer_forward.1} parent=0 // pred_check_branch
    %149 = sbr.rel (0) target = $region25
  $region24: #{prototype_layer_forward.1} parent=0 // pred_region
    _
  $region25: #{prototype_layer_forward.1} parent=0 // pred_fallthru
    _
  // Predicated region
  $region26: #{prototype_layer_forward.1} parent=0 // pred_check
    _
  $region27: #{prototype_layer_forward.1} parent=0 // pred_check_branch
    %151 = sbr.rel (0) target = $region29
  $region28: #{prototype_layer_forward.1} parent=0 // pred_region
    _
  $region29: #{prototype_layer_forward.1} parent=0 // pred_fallthru
    _
  // Predicated region
  $region30: #{prototype_layer_forward.1} parent=0 // pred_check
    _
  $region31: #{prototype_layer_forward.1} parent=0 // pred_check_branch
    %153 = sbr.rel (0) target = $region33
  $region32: #{prototype_layer_forward.1} parent=0 // pred_region
    _
  $region33: #{prototype_layer_forward.1} parent=0 // pred_fallthru
    _

</llo_original>
